<compile_context>
chip_gen: v7x
topology: tpu7x:2x2x1
jax: 0.10.0
libtpu: 0.0.40
codegen_flags: <defaults>
</compile_context>

<pallas_src>
import functools

import jax
import jax.numpy as jnp
from jax.experimental import pallas as pl
from jax.experimental.pallas import tpu as pltpu


def _round_up(v, m):
    return (v + m - 1) // m * m


def _cdiv(a, b):
    return (a + b - 1) // b


def _bf16_activation_ok():
    """v6e/v7x VPU + EUP have packed bf16 paths; keep f32 activations on v5-."""
    try:
        kind = jax.devices()[0].device_kind.lower()
    except Exception:
        return False
    return not any(tag in kind for tag in ("v2", "v3", "v4", "v5"))


def _choose_batch_tile(B, block_m):
    """Batch tile: big enough to amortize ~0.35us/grid-step overhead, >= 2 grid
    steps when B permits (v7x megacore), minimal zero-row padding, 8-aligned."""
    if B <= 8:
        return _round_up(max(B, 1), 8)
    n_tiles = max(2, _cdiv(B, block_m))        # >= 2 steps whenever possible
    tm = _round_up(_cdiv(B, n_tiles), 8)       # minimize last-tile waste
    if tm >= 256:
        tm = _round_up(tm, 256)                # MXU/lane-friendly on v6e/v7x
    elif tm >= 128:
        tm = _round_up(tm, 128)
    return tm


def _resident_spec(block_shape, index_map):
    """Single-buffer constant-index operands (halves their VMEM footprint)."""
    try:
        return pl.BlockSpec(block_shape, index_map, pipeline_mode=pl.Buffered(1))
    except TypeError:  # older API without pipeline_mode: fall back to default
        return pl.BlockSpec(block_shape, index_map)


def _mlp_kernel(x_ref, w1_ref, b1_ref, w2_ref, b2_ref, o_ref, *, bf16_act):
    # MXU sees bf16 operands, accumulates in f32 (cast here: no HBM cast pass).
    x = x_ref[...].astype(jnp.bfloat16)
    h = jnp.dot(x, w1_ref[...], preferred_element_type=jnp.float32)
    if bf16_act:
        # v6e/v7x: packed bf16 VPU add + bf16 EUP tanh; feeds the bf16 2nd dot.
        h = jnp.tanh((h + b1_ref[...]).astype(jnp.bfloat16))
    else:
        # v5e and older: f32-only VPU/EUP; downcast just before the 2nd dot.
        h = jnp.tanh(h + b1_ref[...]).astype(jnp.bfloat16)
    out = jnp.dot(h, w2_ref[...], preferred_element_type=jnp.float32)
    o_ref[...] = (out + b2_ref[...]).astype(o_ref.dtype)


def prepare_ffn_params(w1, b1, w2, b2):
    """Pad + cast the weights ONCE (hoisted out of the per-call path).

    Returns lane-dense (multiple-of-128) bf16 weights and f32 [1, N] biases.
    Store these alongside the model parameters and reuse them every call.
    """
    in_size, hidden_size = w1.shape
    out_size = w2.shape[1]
    in_p, hid_p, out_p = (_round_up(in_size, 128), _round_up(hidden_size, 128),
                          _round_up(out_size, 128))
    w1p = jnp.zeros((in_p, hid_p), jnp.bfloat16).at[:in_size, :hidden_size].set(
        w1.astype(jnp.bfloat16))
    w2p = jnp.zeros((hid_p, out_p), jnp.bfloat16).at[:hidden_size, :out_size].set(
        w2.astype(jnp.bfloat16))
    b1p = jnp.zeros((1, hid_p), jnp.float32).at[0, :hidden_size].set(
        b1.astype(jnp.float32))
    b2p = jnp.zeros((1, out_p), jnp.float32).at[0, :out_size].set(
        b2.astype(jnp.float32))
    return (w1p, b1p, w2p, b2p), out_size


@functools.partial(
    jax.jit, static_argnames=("out_size", "block_m", "out_dtype", "bf16_act"))
def feed_forward_padded(x, w1p, b1p, w2p, b2p, *, out_size, block_m=2048,
                        out_dtype=None, bf16_act=None):
    """Forward pass using pre-padded params from prepare_ffn_params()."""
    if bf16_act is None:
        bf16_act = _bf16_activation_ok()
    if out_dtype is None:
        out_dtype = x.dtype

    B, in_size = x.shape
    in_p, hid_p = w1p.shape
    out_p = w2p.shape[1]

    # Batch tiling: large tiles, >=2 grid steps when B permits, minimal pad.
    tm = _choose_batch_tile(B, block_m)
    grid_m = _cdiv(B, tm)
    b_p = grid_m * tm

    # Only materialize a padded x copy when the shapes actually require it.
    if b_p != B or in_p != in_size:
        xp = jnp.zeros((b_p, in_p), x.dtype).at[:B, :in_size].set(x)
    else:
        xp = x

    # Explicit VMEM budget (single-buffered residents, double-buffered tiles).
    x_isz = jnp.dtype(x.dtype).itemsize
    o_isz = jnp.dtype(out_dtype).itemsize
    vmem_bytes = ((w1p.size + w2p.size) * 2 + (b1p.size + b2p.size) * 4
                  + 2 * tm * in_p * x_isz + 2 * tm * out_p * o_isz
                  + tm * hid_p * 4)
    vmem_limit = None
    if vmem_bytes > (12 << 20):
        # Leave headroom; stay under v7x's 64 MiB physical VMEM per TensorCore.
        vmem_limit = int(min(max(vmem_bytes * 3 // 2, 32 << 20), 56 << 20))

    cost = pl.CostEstimate(
        flops=2 * b_p * (in_p * hid_p + hid_p * out_p),
        transcendentals=b_p * hid_p,
        bytes_accessed=(xp.size * x_isz + (w1p.size + w2p.size) * 2
                        + (b1p.size + b2p.size) * 4 + b_p * out_p * o_isz),
    )

    # TODO(synk): for transformer-sized hidden/out, switch W2 to streamed
    # column blocks (2nd grid axis) + an in-kernel hidden-block accumulator
    # instead of the all-resident design used here for small MLPs.
    out = pl.pallas_call(
        functools.partial(_mlp_kernel, bf16_act=bf16_act),
        out_shape=jax.ShapeDtypeStruct((b_p, out_p), out_dtype),
        grid=(grid_m,),
        in_specs=[
            pl.BlockSpec((tm, in_p), lambda i: (i, 0)),       # x: streamed
            _resident_spec((in_p, hid_p), lambda i: (0, 0)),  # W1: resident
            _resident_spec((1, hid_p), lambda i: (0, 0)),     # b1: resident
            _resident_spec((hid_p, out_p), lambda i: (0, 0)), # W2: resident
            _resident_spec((1, out_p), lambda i: (0, 0)),     # b2: resident
        ],
        out_specs=pl.BlockSpec((tm, out_p), lambda i: (i, 0)),
        compiler_params=pltpu.CompilerParams(
            dimension_semantics=("parallel",),
            vmem_limit_bytes=vmem_limit,
        ),
        cost_estimate=cost,
    )(xp, w1p, b1p, w2p, b2p)

    return out[:B, :out_size]


def feed_forward(x, w1, b1, w2, b2, *, block_m=2048):
    """Convenience one-shot API matching the PyTorch module signature.

    For repeated calls, hoist prepare_ffn_params() out of the loop instead.
    """
    params, out_size = prepare_ffn_params(w1, b1, w2, b2)
    return feed_forward_padded(x, *params, out_size=out_size, block_m=block_m)


if __name__ == "__main__":
    # TODO(synk): update()/set_grad_zero() (manual SGD step + grad zeroing) are
    # training-side utilities; only the forward pass is implemented here.
    in_size, hidden_size, out_size = 32, 64, 16
    batch = 48  # small, but >8 so the batch tiling exercises >=2 grid steps

    key = jax.random.PRNGKey(0)
    k_x, k_w1, k_b1, k_w2, k_b2 = jax.random.split(key, 5)

    # Same init as the PyTorch module: standard-normal weights and biases.
    x = jax.random.normal(k_x, (batch, in_size), jnp.float32)
    w1 = jax.random.normal(k_w1, (in_size, hidden_size), jnp.float32)
    b1 = jax.random.normal(k_b1, (hidden_size,), jnp.float32)
    w2 = jax.random.normal(k_w2, (hidden_size, out_size), jnp.float32)
    b2 = jax.random.normal(k_b2, (out_size,), jnp.float32)

    # Hoisted pad/cast (done once), then the per-call forward.
    params, osz = prepare_ffn_params(w1, b1, w2, b2)
    out = feed_forward_padded(x, *params, out_size=osz)
    jax.block_until_ready(out)
    assert out.shape == (batch, out_size)
    assert out.dtype == x.dtype

    # Tight check against a reference mirroring the kernel's bf16 operands
    # (and its activation-rounding order, which depends on the chip).
    bf16_act = _bf16_activation_ok()
    xb = x.astype(jnp.bfloat16).astype(jnp.float32)
    w1b = w1.astype(jnp.bfloat16).astype(jnp.float32)
    w2b = w2.astype(jnp.bfloat16).astype(jnp.float32)
    z = xb @ w1b + b1
    if bf16_act:
        h_ref = jnp.tanh(z.astype(jnp.bfloat16).astype(jnp.float32))
    else:
        h_ref = jnp.tanh(z)
    ref_bf16 = h_ref.astype(jnp.bfloat16).astype(jnp.float32) @ w2b + b2
    assert jnp.allclose(out, ref_bf16, atol=5e-2, rtol=2e-2)

    # Loose sanity check against the exact f32 module semantics
    # (bf16 MXU operands bound the achievable parity).
    ref_f32 = jnp.tanh(x @ w1 + b1) @ w2 + b2
    assert jnp.allclose(out, ref_f32, atol=5e-1, rtol=1e-1)

    print("KERNEL_OK")
</pallas_src>

<mosaic_0001>
module attributes {stable_mosaic.version = 11 : i64} {
  func.func @_mlp_kernel(%arg0: i32, %arg1: memref<24x128xf32, #tpu.memory_space<vmem>>, %arg2: memref<128x128xbf16, #tpu.memory_space<vmem>>, %arg3: memref<1x128xf32, #tpu.memory_space<vmem>>, %arg4: memref<128x128xbf16, #tpu.memory_space<vmem>>, %arg5: memref<1x128xf32, #tpu.memory_space<vmem>>, %arg6: memref<24x128xf32, #tpu.memory_space<vmem>>) attributes {dimension_semantics = [#tpu.dimension_semantics<parallel>], iteration_bounds = array<i64: 2>, scalar_prefetch = 0 : i64, scratch_operands = 0 : i64, tpu.core_type = #tpu.core_type<tc>, window_params = [{transform_indices = @transform_0, window_bounds = array<i64: 24, 128>}, {pipeline_mode = #tpu.pipeline_mode<synchronous>, transform_indices = @transform_1, window_bounds = array<i64: 128, 128>}, {pipeline_mode = #tpu.pipeline_mode<synchronous>, transform_indices = @transform_2, window_bounds = array<i64: 1, 128>}, {pipeline_mode = #tpu.pipeline_mode<synchronous>, transform_indices = @transform_3, window_bounds = array<i64: 128, 128>}, {pipeline_mode = #tpu.pipeline_mode<synchronous>, transform_indices = @transform_4, window_bounds = array<i64: 1, 128>}, {transform_indices = @transform_5, window_bounds = array<i64: 24, 128>}]} {
    %c0 = arith.constant 0 : index
    %c0_0 = arith.constant 0 : index
    %0 = vector.load %arg1[%c0, %c0_0] : memref<24x128xf32, #tpu.memory_space<vmem>>, vector<24x128xf32>
    %1 = arith.truncf %0 : vector<24x128xf32> to vector<24x128xbf16>
    %c0_1 = arith.constant 0 : index
    %c0_2 = arith.constant 0 : index
    %2 = vector.load %arg2[%c0_1, %c0_2] : memref<128x128xbf16, #tpu.memory_space<vmem>>, vector<128x128xbf16>
    %cst = arith.constant dense<0.000000e+00> : vector<24x128xf32>
    %3 = tpu.matmul %1, %2, %cst {dimension_numbers = #tpu.dot_dimension_numbers<[1], [0], [0], [1], [0, 0, 1, 1], [], []>} : vector<24x128xbf16>, vector<128x128xbf16>, vector<24x128xf32> -> vector<24x128xf32>
    %c0_3 = arith.constant 0 : index
    %c0_4 = arith.constant 0 : index
    %4 = vector.load %arg3[%c0_3, %c0_4] : memref<1x128xf32, #tpu.memory_space<vmem>>, vector<1x128xf32>
    %5 = vector.broadcast %4 : vector<1x128xf32> to vector<24x128xf32>
    %6 = arith.addf %3, %5 : vector<24x128xf32>
    %7 = arith.truncf %6 : vector<24x128xf32> to vector<24x128xbf16>
    %8 = math.tanh %7 : vector<24x128xbf16>
    %c0_5 = arith.constant 0 : index
    %c0_6 = arith.constant 0 : index
    %9 = vector.load %arg4[%c0_5, %c0_6] : memref<128x128xbf16, #tpu.memory_space<vmem>>, vector<128x128xbf16>
    %cst_7 = arith.constant dense<0.000000e+00> : vector<24x128xf32>
    %10 = tpu.matmul %8, %9, %cst_7 {dimension_numbers = #tpu.dot_dimension_numbers<[1], [0], [0], [1], [0, 0, 1, 1], [], []>} : vector<24x128xbf16>, vector<128x128xbf16>, vector<24x128xf32> -> vector<24x128xf32>
    %c0_8 = arith.constant 0 : index
    %c0_9 = arith.constant 0 : index
    %11 = vector.load %arg5[%c0_8, %c0_9] : memref<1x128xf32, #tpu.memory_space<vmem>>, vector<1x128xf32>
    %12 = vector.broadcast %11 : vector<1x128xf32> to vector<24x128xf32>
    %13 = arith.addf %10, %12 : vector<24x128xf32>
    %c0_10 = arith.constant 0 : index
    %c0_11 = arith.constant 0 : index
    %14 = vector.load %arg6[%c0_10, %c0_11] : memref<24x128xf32, #tpu.memory_space<vmem>>, vector<24x128xf32>
    tpu.vector_store %arg6[%c0_10, %c0_11], %13 {strides = array<i32>} : memref<24x128xf32, #tpu.memory_space<vmem>>, vector<24x128xf32>,
    return
  }
  func.func @transform_0(%arg0: i32) -> (i32, i32) {
    %c0_i32 = arith.constant 0 : i32
    %c0_i32_0 = arith.constant 0 : i32
    return %arg0, %c0_i32 : i32, i32
  }
  func.func @transform_1(%arg0: i32) -> (i32, i32) {
    %c0_i32 = arith.constant 0 : i32
    %c0_i32_0 = arith.constant 0 : i32
    %c0_i32_1 = arith.constant 0 : i32
    return %c0_i32, %c0_i32_0 : i32, i32
  }
  func.func @transform_2(%arg0: i32) -> (i32, i32) {
    %c0_i32 = arith.constant 0 : i32
    %c0_i32_0 = arith.constant 0 : i32
    %c0_i32_1 = arith.constant 0 : i32
    return %c0_i32, %c0_i32_0 : i32, i32
  }
  func.func @transform_3(%arg0: i32) -> (i32, i32) {
    %c0_i32 = arith.constant 0 : i32
    %c0_i32_0 = arith.constant 0 : i32
    %c0_i32_1 = arith.constant 0 : i32
    return %c0_i32, %c0_i32_0 : i32, i32
  }
  func.func @transform_4(%arg0: i32) -> (i32, i32) {
    %c0_i32 = arith.constant 0 : i32
    %c0_i32_0 = arith.constant 0 : i32
    %c0_i32_1 = arith.constant 0 : i32
    return %c0_i32, %c0_i32_0 : i32, i32
  }
  func.func @transform_5(%arg0: i32) -> (i32, i32) {
    %c0_i32 = arith.constant 0 : i32
    %c0_i32_0 = arith.constant 0 : i32
    return %arg0, %c0_i32 : i32, i32
  }
}

</mosaic_0001>

<llo_original>
// kernel: feed_forward_padded.1
$region0: #{feed_forward_padded.1}
  #allocation0 [shape = 'u32[]', space=smem, size = 0x4, offset = 0x4, fixed_abs, tag = 'smem constant byte address 0x4 - core index']
  #allocation1 [shape = 'u32[144,128]{1,0:T(1,128)}', space=vmem, size = 0x12000, scoped, tag = 'internal scratch']
  %s0 = inlined_call_operand.vmem [shape: f32[48,128], index: 0, kind: input, shape index: {}]
  %s1 = inlined_call_operand.vmem [shape: bf16[128,128], index: 1, kind: input, shape index: {}]
  %s2 = inlined_call_operand.vmem [shape: f32[1,128], index: 2, kind: input, shape index: {}]
  %s3 = inlined_call_operand.vmem [shape: bf16[128,128], index: 3, kind: input, shape index: {}]
  %s4 = inlined_call_operand.vmem [shape: f32[1,128], index: 4, kind: input, shape index: {}]
  %s5 = inlined_call_operand.vmem [shape: f32[48,128], index: 5, kind: output, shape index: {}]
  %s6 = sld [smem:[#allocation0]]
  $region53: #{feed_forward_padded.1} parent=0
    _
  %s8 = ssub.s32 1, %s6
  %s9 = scalar_select 0, %s8, %s6
  loop: start=0, step=1, limit=4
  $region2: #{feed_forward_padded.1} parent=0 // loop_pre_header
    _
  $region3: #{feed_forward_padded.1} parent=0 // loop_header
    %s11 = sphi 0, %s15
    %p12 = scmp.ge.s32.totalorder %s11, 4
    %s21 = sphi 0, %s23
    %s24 = sphi 0, %s21
    %s25 = sphi 0, %s24
    %s41 = sphi 0, %s25
    %s45 = sphi 0, %s45
    %s47 = sphi 0, %s45
    %s48 = sphi 0, %s47
    %s62 = sphi 0, %s48
    %s66 = sphi 0, %s66
    %s68 = sphi 0, %s66
    %s69 = sphi 0, %s68
    %s83 = sphi 0, %s69
    %s87 = sphi 0, %s87
    %s89 = sphi 0, %s87
    %s90 = sphi 0, %s89
    %s104 = sphi 0, %s90
    %s108 = sphi 0, %s108
    %s110 = sphi 0, %s108
    %s111 = sphi 0, %s110
    %s125 = sphi 0, %s111
    %s131 = sphi 0, %s133
    %s134 = sphi 0, %s131
    %s135 = sphi 0, %s134
    %s151 = sphi 0, %s135
  $region4: #{feed_forward_padded.1} parent=0 // loop_header_branch
    %14 = sbr.rel (%p12) target = $region8
  $region5: #{feed_forward_padded.1} parent=0 // loop_body
    %s16 = ssub.s32 %s11, 1
    %s17 = ssub.s32 %s11, 2
    %s18 = sadd.s32 %s11, 1
    %s19 = ssub.s32 %s11, %s18
    %p20 = scmp.eq.s32.totalorder %s19, 0
    %s22 = sadd.s32 %s21, 1
    %s23 = scalar_select %p20, %s21, %s22
    %p26 = pneg %p20
    %p27 = scmp.eq.s32.totalorder %s11, 1
    %p28 = por %p26, %p27
    %p29 = scmp.ne.s32.totalorder %s21, %s24
    %p30 = scmp.eq.s32.totalorder %s11, 0
    %p31 = por %p29, %p30
    %p32 = scmp.ne.s32.totalorder %s21, %s24
    %p33 = scmp.eq.s32.totalorder %s16, 1
    %p34 = por %p32, %p33
    %p35 = scmp.ne.s32.totalorder %s24, %s25
    %p36 = scmp.eq.s32.totalorder %s16, 0
    %p37 = por %p35, %p36
    %p38 = scmp.ne.s32.totalorder %s24, %s25
    %p39 = scmp.eq.s32.totalorder %s17, 1
    %p40 = por %p38, %p39
    %p42 = scmp.ne.s32.totalorder %s25, %s41
    %p43 = scmp.eq.s32.totalorder %s17, 0
    %p44 = por %p42, %p43
    %s46 = sadd.s32 %s45, 1
    %p49 = scmp.eq.s32.totalorder %s11, 1
    %p50 = scmp.ne.s32.totalorder %s45, %s47
    %p51 = scmp.eq.s32.totalorder %s11, 0
    %p52 = por %p50, %p51
    %p53 = scmp.ne.s32.totalorder %s45, %s47
    %p54 = scmp.eq.s32.totalorder %s16, 1
    %p55 = por %p53, %p54
    %p56 = scmp.ne.s32.totalorder %s47, %s48
    %p57 = scmp.eq.s32.totalorder %s16, 0
    %p58 = por %p56, %p57
    %p59 = scmp.ne.s32.totalorder %s47, %s48
    %p60 = scmp.eq.s32.totalorder %s17, 1
    %p61 = por %p59, %p60
    %p63 = scmp.ne.s32.totalorder %s48, %s62
    %p64 = scmp.eq.s32.totalorder %s17, 0
    %p65 = por %p63, %p64
    %s67 = sadd.s32 %s66, 1
    %p70 = scmp.eq.s32.totalorder %s11, 1
    %p71 = scmp.ne.s32.totalorder %s66, %s68
    %p72 = scmp.eq.s32.totalorder %s11, 0
    %p73 = por %p71, %p72
    %p74 = scmp.ne.s32.totalorder %s66, %s68
    %p75 = scmp.eq.s32.totalorder %s16, 1
    %p76 = por %p74, %p75
    %p77 = scmp.ne.s32.totalorder %s68, %s69
    %p78 = scmp.eq.s32.totalorder %s16, 0
    %p79 = por %p77, %p78
    %p80 = scmp.ne.s32.totalorder %s68, %s69
    %p81 = scmp.eq.s32.totalorder %s17, 1
    %p82 = por %p80, %p81
    %p84 = scmp.ne.s32.totalorder %s69, %s83
    %p85 = scmp.eq.s32.totalorder %s17, 0
    %p86 = por %p84, %p85
    %s88 = sadd.s32 %s87, 1
    %p91 = scmp.eq.s32.totalorder %s11, 1
    %p92 = scmp.ne.s32.totalorder %s87, %s89
    %p93 = scmp.eq.s32.totalorder %s11, 0
    %p94 = por %p92, %p93
    %p95 = scmp.ne.s32.totalorder %s87, %s89
    %p96 = scmp.eq.s32.totalorder %s16, 1
    %p97 = por %p95, %p96
    %p98 = scmp.ne.s32.totalorder %s89, %s90
    %p99 = scmp.eq.s32.totalorder %s16, 0
    %p100 = por %p98, %p99
    %p101 = scmp.ne.s32.totalorder %s89, %s90
    %p102 = scmp.eq.s32.totalorder %s17, 1
    %p103 = por %p101, %p102
    %p105 = scmp.ne.s32.totalorder %s90, %s104
    %p106 = scmp.eq.s32.totalorder %s17, 0
    %p107 = por %p105, %p106
    %s109 = sadd.s32 %s108, 1
    %p112 = scmp.eq.s32.totalorder %s11, 1
    %p113 = scmp.ne.s32.totalorder %s108, %s110
    %p114 = scmp.eq.s32.totalorder %s11, 0
    %p115 = por %p113, %p114
    %p116 = scmp.ne.s32.totalorder %s108, %s110
    %p117 = scmp.eq.s32.totalorder %s16, 1
    %p118 = por %p116, %p117
    %p119 = scmp.ne.s32.totalorder %s110, %s111
    %p120 = scmp.eq.s32.totalorder %s16, 0
    %p121 = por %p119, %p120
    %p122 = scmp.ne.s32.totalorder %s110, %s111
    %p123 = scmp.eq.s32.totalorder %s17, 1
    %p124 = por %p122, %p123
    %p126 = scmp.ne.s32.totalorder %s111, %s125
    %p127 = scmp.eq.s32.totalorder %s17, 0
    %p128 = por %p126, %p127
    %s129 = ssub.s32 %s11, %s18
    %p130 = scmp.eq.s32.totalorder %s129, 0
    %s132 = sadd.s32 %s131, 1
    %s133 = scalar_select %p130, %s131, %s132
    %p136 = pneg %p130
    %p137 = scmp.eq.s32.totalorder %s11, 1
    %p138 = por %p136, %p137
    %p139 = scmp.ne.s32.totalorder %s131, %s134
    %p140 = scmp.eq.s32.totalorder %s11, 0
    %p141 = por %p139, %p140
    %p142 = scmp.ne.s32.totalorder %s131, %s134
    %p143 = scmp.eq.s32.totalorder %s16, 1
    %p144 = por %p142, %p143
    %p145 = scmp.ne.s32.totalorder %s134, %s135
    %p146 = scmp.eq.s32.totalorder %s16, 0
    %p147 = por %p145, %p146
    %p148 = scmp.ne.s32.totalorder %s134, %s135
    %p149 = scmp.eq.s32.totalorder %s17, 1
    %p150 = por %p148, %p149
    %p152 = scmp.ne.s32.totalorder %s135, %s151
    %p153 = scmp.eq.s32.totalorder %s17, 0
    %p154 = por %p152, %p153
    %p155 = scmp.le.s32.totalorder 1, %s11
    %p156 = scmp.lt.s32.totalorder %s11, 3
    %p157 = pnand %p155, %p156
    %p158 = pneg %p157
    // Predicated region
    $region9: #{feed_forward_padded.1} parent=5 // pred_check
      _
    $region10: #{feed_forward_padded.1} parent=5 // pred_check_branch
      %160 = sbr.rel (%p157) target = $region12
    $region11: #{feed_forward_padded.1} parent=5 // pred_region
      %s161 = ssub.s32 %s11, 1
      // Predicated region
      $region13: #{feed_forward_padded.1} parent=11 // pred_check
        %p162 = pneg %p58
      $region14: #{feed_forward_padded.1} parent=11 // pred_check_branch
        %164 = sbr.rel (%p162) target = $region16
      $region15: #{feed_forward_padded.1} parent=11 // pred_region
        _
      $region16: #{feed_forward_padded.1} parent=11 // pred_fallthru
        _
      // Predicated region
      $region17: #{feed_forward_padded.1} parent=11 // pred_check
        %p165 = pneg %p79
      $region18: #{feed_forward_padded.1} parent=11 // pred_check_branch
        %167 = sbr.rel (%p165) target = $region20
      $region19: #{feed_forward_padded.1} parent=11 // pred_region
        _
      $region20: #{feed_forward_padded.1} parent=11 // pred_fallthru
        _
      // Predicated region
      $region21: #{feed_forward_padded.1} parent=11 // pred_check
        %p168 = pneg %p100
      $region22: #{feed_forward_padded.1} parent=11 // pred_check_branch
        %170 = sbr.rel (%p168) target = $region24
      $region23: #{feed_forward_padded.1} parent=11 // pred_region
        _
      $region24: #{feed_forward_padded.1} parent=11 // pred_fallthru
        _
      // Predicated region
      $region25: #{feed_forward_padded.1} parent=11 // pred_check
        %p171 = pneg %p121
      $region26: #{feed_forward_padded.1} parent=11 // pred_check_branch
        %173 = sbr.rel (%p171) target = $region28
      $region27: #{feed_forward_padded.1} parent=11 // pred_region
        _
      $region28: #{feed_forward_padded.1} parent=11 // pred_fallthru
        _
    $region12: #{feed_forward_padded.1} parent=5 // pred_fallthru
      _
    %p174 = scmp.lt.s32.totalorder %s11, 2
    // Predicated region
    $region29: #{feed_forward_padded.1} parent=5 // pred_check
      %p175 = pneg %p174
    $region30: #{feed_forward_padded.1} parent=5 // pred_check_branch
      %177 = sbr.rel (%p175) target = $region32
    $region31: #{feed_forward_padded.1} parent=5 // pred_region
      // Predicated region
      $region33: #{feed_forward_padded.1} parent=31 // pred_check
        %p178 = pneg %p31
      $region34: #{feed_forward_padded.1} parent=31 // pred_check_branch
        %180 = sbr.rel (%p178) target = $region36
      $region35: #{feed_forward_padded.1} parent=31 // pred_region
        %s181 = smul.u32 3, %s11
        %p182 = scmp.lt.s32.totalorder %s181, 5
        %s183 = scalar_select %p182, %s181, 5
        %s184 = smul.addr %s183, 8
        %s185 = scalar_lea.vmem %s0, %s184
        %s186 = smul.u32 3, %s11
      $region36: #{feed_forward_padded.1} parent=31 // pred_fallthru
        _
    $region32: #{feed_forward_padded.1} parent=5 // pred_fallthru
      _
    %p187 = scmp.le.s32.totalorder 1, %s11
    %p188 = scmp.lt.s32.totalorder %s11, 3
    %p189 = pnand %p187, %p188
    %p190 = pneg %p189
    // Predicated region
    $region37: #{feed_forward_padded.1} parent=5 // pred_check
      _
    $region38: #{feed_forward_padded.1} parent=5 // pred_check_branch
      %192 = sbr.rel (%p189) target = $region40
    $region39: #{feed_forward_padded.1} parent=5 // pred_region
      %s193 = ssub.s32 %s11, 1
      %s194 = smul.u32 3, %s16
      %p195 = scmp.lt.s32.totalorder %s194, 5
      %s196 = scalar_select %p195, %s194, 5
      %s197 = smul.addr %s196, 8
      %s198 = scalar_lea.vmem %s0, %s197
      %p199 = pneg %p37
      %p200 = pneg %p34
      %p201 = pneg %p58
      %p202 = pneg %p55
      %p203 = pneg %p79
      %p204 = pneg %p76
      %p205 = pneg %p100
      %p206 = pneg %p97
      %p207 = pneg %p121
      %p208 = pneg %p118
      %p209 = pneg %p147
      %p210 = pneg %p144
      %s211 = smul.u32 3, %s16
      %p212 = scmp.lt.s32.totalorder %s211, 5
      %s213 = scalar_select %p212, %s211, 5
      %s214 = smul.addr %s213, 8
      %s215 = scalar_lea.vmem %s5, %s214
      %s216 = smul.u32 3, %s16
      %p217 = scmp.lt.s32.totalorder %s216, 5
      %s218 = scalar_select %p217, %s216, 5
      %s219 = smul.addr %s218, 8
      %s220 = scalar_lea.vmem %s0, %s219
      %s221 = smul.u32 3, %s16
      %s222 = smul.u32 3, %s16
      %p223 = scmp.lt.s32.totalorder %s222, 5
      %s224 = scalar_select %p223, %s222, 5
      %s225 = smul.addr %s224, 8
      %s226 = scalar_lea.vmem %s5, %s225
      %s227 = smul.u32 3, %s16
      %v229 = vld [vmem:[%s220] sm:$0xff]
      %v230 = vld [vmem:[%s220 + $0x8] sm:$0xff]
      %v231 = vld [vmem:[%s220 + $0x10] sm:$0xff]
      %v232 = vpack.c.bf16 %v230, %v229
      %v233 = vpack.c.bf16 %v231, %v231
      %v234 = vld [vmem:[%s1] sm:$0xf]
      %v235 = vld [vmem:[%s1 + $0x4] sm:$0xf]
      %v236 = vld [vmem:[%s1 + $0x8] sm:$0xf]
      %v237 = vld [vmem:[%s1 + $0xc] sm:$0xf]
      %v238 = vld [vmem:[%s1 + $0x10] sm:$0xf]
      %v239 = vld [vmem:[%s1 + $0x14] sm:$0xf]
      %v240 = vld [vmem:[%s1 + $0x18] sm:$0xf]
      %v241 = vld [vmem:[%s1 + $0x1c] sm:$0xf]
      %v242 = vld [vmem:[%s1 + $0x20] sm:$0xf]
      %v243 = vld [vmem:[%s1 + $0x24] sm:$0xf]
      %v244 = vld [vmem:[%s1 + $0x28] sm:$0xf]
      %v245 = vld [vmem:[%s1 + $0x2c] sm:$0xf]
      %v246 = vld [vmem:[%s1 + $0x30] sm:$0xf]
      %v247 = vld [vmem:[%s1 + $0x34] sm:$0xf]
      %v248 = vld [vmem:[%s1 + $0x38] sm:$0xf]
      %v249 = vld [vmem:[%s1 + $0x3c] sm:$0xf]
      %v250 = vld [vmem:[%s2] sm:$0x1]
      %v252 = vlaneseq
      %v253 = vshrl.u32 %v252, 7
      %v254 = vsub.s32 0, %v253
      %v255 = vrot.slane %v250, %v254
      %v273 = vunpack.c.l.b16 %v234
      %v274 = vunpack.c.l.b16 %v235
      %v275 = vunpack.c.l.b16 %v236
      %v276 = vunpack.c.l.b16 %v237
      %v277 = vunpack.c.l.b16 %v238
      %v278 = vunpack.c.l.b16 %v239
      %v279 = vunpack.c.l.b16 %v240
      %v280 = vunpack.c.l.b16 %v241
      %v281 = vunpack.c.l.b16 %v242
      %v282 = vunpack.c.l.b16 %v243
      %v283 = vunpack.c.l.b16 %v244
      %v284 = vunpack.c.l.b16 %v245
      %v285 = vunpack.c.l.b16 %v246
      %v286 = vunpack.c.l.b16 %v247
      %v287 = vunpack.c.l.b16 %v248
      %v288 = vunpack.c.l.b16 %v249
      %v289 = vpack.c.b16 %v274, %v273
      %v290 = vpack.c.b16 %v276, %v275
      %v291 = vpack.c.b16 %v278, %v277
      %v292 = vpack.c.b16 %v280, %v279
      %v293 = vpack.c.b16 %v282, %v281
      %v294 = vpack.c.b16 %v284, %v283
      %v295 = vpack.c.b16 %v286, %v285
      %v296 = vpack.c.b16 %v288, %v287
      %305 = vmatprep.subr.bf16.mxu0 0
      %306 = vmatpush1.bf16.msra.mxu0 %v289
      %307 = vmatprep.subr.bf16.mxu0 0
      %308 = vmatpush1.bf16.msra.mxu0 %v290
      %309 = vmatprep.subr.bf16.mxu0 0
      %310 = vmatpush1.bf16.msra.mxu0 %v291
      %311 = vmatprep.subr.bf16.mxu0 0
      %312 = vmatpush1.bf16.msra.mxu0 %v292
      %313 = vmatprep.subr.bf16.mxu0 0
      %314 = vmatpush1.bf16.msra.mxu0 %v293
      %315 = vmatprep.subr.bf16.mxu0 0
      %316 = vmatpush1.bf16.msra.mxu0 %v294
      %317 = vmatprep.subr.bf16.mxu0 0
      %318 = vmatpush1.bf16.msra.mxu0 %v295
      %319 = vmatprep.subr.bf16.mxu0 0
      %320 = vmatpush1.bf16.msra.mxu0 %v296
      %321 = vmatprep.subr.bf16.mxu0 0
      %322 = vmatpush1.bf16.msra.mxu0 0
      %323 = vmatprep.subr.bf16.mxu0 0
      %324 = vmatpush1.bf16.msra.mxu0 0
      %325 = vmatprep.subr.bf16.mxu0 0
      %326 = vmatpush1.bf16.msra.mxu0 0
      %327 = vmatprep.subr.bf16.mxu0 0
      %328 = vmatpush1.bf16.msra.mxu0 0
      %329 = vmatprep.subr.bf16.mxu0 0
      %330 = vmatpush1.bf16.msra.mxu0 0
      %331 = vmatprep.subr.bf16.mxu0 0
      %332 = vmatpush1.bf16.msra.mxu0 0
      %333 = vmatprep.subr.bf16.mxu0 0
      %334 = vmatpush1.bf16.msra.mxu0 0
      %335 = vmatprep.subr.bf16.mxu0 0
      %336 = vmatpush1.bf16.msra.mxu0 0
      %337 = vmatprep.mubr.bf16.mxu0 0
      %338 = vmatmul.mubr.bf16.gmra.mrb[0].mxu0 %v232
      %v339 = vpop.f32.mrb[0].mxu0
      %v340 = vadd.f32 %v255, %v339
      %v341 = vpop.f32.mrb[0].mxu0
      %v342 = vpop.f32.mrb[0].mxu0
      %v343 = vadd.f32 %v255, %v342
      %v344 = vpop.f32.mrb[0].mxu0
      %345 = vmatprep.mubr.bf16.mxu0 0
      %346 = vmatmul.mubr.bf16.gmra.mrb[0].mxu0 %v233
      %v347 = vpop.f32.mrb[0].mxu0
      %v348 = vadd.f32 %v255, %v347
      %v349 = vpop.f32.mrb[0].mxu0
      %v350 = vpop.f32.mrb[0].mxu0
      %v351 = vpop.f32.mrb[0].mxu0
      %352 = vdwg.mxu0
      %v353 = vpack.c.bf16 %v343, %v340
      %v354 = vpack.c.bf16 %v348, %v348
      %v355 = vtanh.bf16.pop %v353
      %v356 = vtanh.bf16.pop %v354
      %v357 = vld [vmem:[%s3] sm:$0xf]
      %v358 = vld [vmem:[%s3 + $0x4] sm:$0xf]
      %v359 = vld [vmem:[%s3 + $0x8] sm:$0xf]
      %v360 = vld [vmem:[%s3 + $0xc] sm:$0xf]
      %v361 = vld [vmem:[%s3 + $0x10] sm:$0xf]
      %v362 = vld [vmem:[%s3 + $0x14] sm:$0xf]
      %v363 = vld [vmem:[%s3 + $0x18] sm:$0xf]
      %v364 = vld [vmem:[%s3 + $0x1c] sm:$0xf]
      %v365 = vld [vmem:[%s3 + $0x20] sm:$0xf]
      %v366 = vld [vmem:[%s3 + $0x24] sm:$0xf]
      %v367 = vld [vmem:[%s3 + $0x28] sm:$0xf]
      %v368 = vld [vmem:[%s3 + $0x2c] sm:$0xf]
      %v369 = vld [vmem:[%s3 + $0x30] sm:$0xf]
      %v370 = vld [vmem:[%s3 + $0x34] sm:$0xf]
      %v371 = vld [vmem:[%s3 + $0x38] sm:$0xf]
      %v372 = vld [vmem:[%s3 + $0x3c] sm:$0xf]
      %v373 = vld [vmem:[%s4] sm:$0x1]
      %v375 = vlaneseq
      %v376 = vshrl.u32 %v375, 7
      %v377 = vsub.s32 0, %v376
      %v378 = vrot.slane %v373, %v377
      %v396 = vunpack.c.l.b16 %v357
      %v397 = vunpack.c.l.b16 %v358
      %v398 = vunpack.c.l.b16 %v359
      %v399 = vunpack.c.l.b16 %v360
      %v400 = vunpack.c.l.b16 %v361
      %v401 = vunpack.c.l.b16 %v362
      %v402 = vunpack.c.l.b16 %v363
      %v403 = vunpack.c.l.b16 %v364
      %v404 = vunpack.c.l.b16 %v365
      %v405 = vunpack.c.l.b16 %v366
      %v406 = vunpack.c.l.b16 %v367
      %v407 = vunpack.c.l.b16 %v368
      %v408 = vunpack.c.l.b16 %v369
      %v409 = vunpack.c.l.b16 %v370
      %v410 = vunpack.c.l.b16 %v371
      %v411 = vunpack.c.l.b16 %v372
      %v412 = vpack.c.b16 %v397, %v396
      %v413 = vpack.c.b16 %v399, %v398
      %v414 = vpack.c.b16 %v401, %v400
      %v415 = vpack.c.b16 %v403, %v402
      %v416 = vpack.c.b16 %v405, %v404
      %v417 = vpack.c.b16 %v407, %v406
      %v418 = vpack.c.b16 %v409, %v408
      %v419 = vpack.c.b16 %v411, %v410
      %428 = vmatprep.subr.bf16.mxu0 0
      %429 = vmatpush1.bf16.msra.mxu0 %v412
      %430 = vmatprep.subr.bf16.mxu0 0
      %431 = vmatpush1.bf16.msra.mxu0 %v413
      %432 = vmatprep.subr.bf16.mxu0 0
      %433 = vmatpush1.bf16.msra.mxu0 %v414
      %434 = vmatprep.subr.bf16.mxu0 0
      %435 = vmatpush1.bf16.msra.mxu0 %v415
      %436 = vmatprep.subr.bf16.mxu0 0
      %437 = vmatpush1.bf16.msra.mxu0 %v416
      %438 = vmatprep.subr.bf16.mxu0 0
      %439 = vmatpush1.bf16.msra.mxu0 %v417
      %440 = vmatprep.subr.bf16.mxu0 0
      %441 = vmatpush1.bf16.msra.mxu0 %v418
      %442 = vmatprep.subr.bf16.mxu0 0
      %443 = vmatpush1.bf16.msra.mxu0 %v419
      %444 = vmatprep.subr.bf16.mxu0 0
      %445 = vmatpush1.bf16.msra.mxu0 0
      %446 = vmatprep.subr.bf16.mxu0 0
      %447 = vmatpush1.bf16.msra.mxu0 0
      %448 = vmatprep.subr.bf16.mxu0 0
      %449 = vmatpush1.bf16.msra.mxu0 0
      %450 = vmatprep.subr.bf16.mxu0 0
      %451 = vmatpush1.bf16.msra.mxu0 0
      %452 = vmatprep.subr.bf16.mxu0 0
      %453 = vmatpush1.bf16.msra.mxu0 0
      %454 = vmatprep.subr.bf16.mxu0 0
      %455 = vmatpush1.bf16.msra.mxu0 0
      %456 = vmatprep.subr.bf16.mxu0 0
      %457 = vmatpush1.bf16.msra.mxu0 0
      %458 = vmatprep.subr.bf16.mxu0 0
      %459 = vmatpush1.bf16.msra.mxu0 0
      %460 = vmatprep.mubr.bf16.mxu0 0
      %461 = vmatmul.mubr.bf16.gmra.mrb[0].mxu0 %v355
      %v462 = vpop.f32.mrb[0].mxu0
      %v463 = vadd.f32 %v378, %v462
      %v464 = vpop.f32.mrb[0].mxu0
      %v465 = vpop.f32.mrb[0].mxu0
      %v466 = vadd.f32 %v378, %v465
      %v467 = vpop.f32.mrb[0].mxu0
      %468 = vmatprep.mubr.bf16.mxu0 0
      %469 = vmatmul.mubr.bf16.gmra.mrb[0].mxu0 %v356
      %v470 = vpop.f32.mrb[0].mxu0
      %v471 = vadd.f32 %v378, %v470
      %v472 = vpop.f32.mrb[0].mxu0
      %v473 = vpop.f32.mrb[0].mxu0
      %v474 = vpop.f32.mrb[0].mxu0
      %475 = vdwg.mxu0
      %476 = vst [vmem:[%s226] sm:$0xff] %v463
      %477 = vst [vmem:[%s226 + $0x8] sm:$0xff] %v466
      %478 = vst [vmem:[%s226 + $0x10] sm:$0xff] %v471
      %s479 = smul.u32 3, %s16
      %p480 = scmp.lt.s32.totalorder %s479, 5
      %s481 = scalar_select %p480, %s479, 5
      %s482 = smul.addr %s481, 8
      %s483 = scalar_lea.vmem %s5, %s482
      // Predicated region
      $region41: #{feed_forward_padded.1} parent=39 // pred_check
        %p484 = pneg %p144
      $region42: #{feed_forward_padded.1} parent=39 // pred_check_branch
        %486 = sbr.rel (%p484) target = $region44
      $region43: #{feed_forward_padded.1} parent=39 // pred_region
        %s487 = smul.u32 3, %s16
      $region44: #{feed_forward_padded.1} parent=39 // pred_fallthru
        _
    $region40: #{feed_forward_padded.1} parent=5 // pred_fallthru
      _
    %p488 = scmp.le.s32.totalorder 2, %s11
    // Predicated region
    $region45: #{feed_forward_padded.1} parent=5 // pred_check
      %p489 = pneg %p488
    $region46: #{feed_forward_padded.1} parent=5 // pred_check_branch
      %491 = sbr.rel (%p489) target = $region48
    $region47: #{feed_forward_padded.1} parent=5 // pred_region
      %s492 = ssub.s32 %s11, 2
      // Predicated region
      $region49: #{feed_forward_padded.1} parent=47 // pred_check
        %p493 = pneg %p150
      $region50: #{feed_forward_padded.1} parent=47 // pred_check_branch
        %495 = sbr.rel (%p493) target = $region52
      $region51: #{feed_forward_padded.1} parent=47 // pred_region
        %s496 = smul.u32 3, %s17
        %p497 = scmp.lt.s32.totalorder %s496, 5
        %s498 = scalar_select %p497, %s496, 5
        %s499 = smul.addr %s498, 8
        %s500 = scalar_lea.vmem %s5, %s499
      $region52: #{feed_forward_padded.1} parent=47 // pred_fallthru
        _
    $region48: #{feed_forward_padded.1} parent=5 // pred_fallthru
      _
  $region6: #{feed_forward_padded.1} parent=0 // loop_footer
    %s15 = sadd.s32 1, %s11
  $region7: #{feed_forward_padded.1} parent=0 // loop_footer_branch
    %10 = sbr.rel target = $region3
  $region8: #{feed_forward_padded.1} parent=0 // loop_exit
    _

</llo_original>
